<compile_context>
chip_gen: v6e
topology: v6e:2x2x1
jax: 0.10.0
libtpu: 0.0.40
codegen_flags: <defaults>
</compile_context>

<pallas_src>
import functools
import math

import jax
import jax.numpy as jnp
from jax.experimental import pallas as pl
from jax.experimental.pallas import tpu as pltpu


# ------------------------------ tiling helpers ------------------------------

def _pick_tile(dim, target, align):
    """Largest tile <= target that divides `dim` and is a multiple of `align`;
    falls back to the full dim (a full-extent block is always legal)."""
    if dim <= target:
        return dim
    t = (target // align) * align
    while t >= align:
        if dim % t == 0:
            return t
        t -= align
    return dim


def _time_chunk(seq_len, target=16):
    t = min(seq_len, target)
    while seq_len % t:
        t -= 1
    return t


# ----------------------------- Pallas kernels ------------------------------

def _matmul_kernel(x_ref, w_ref, b_ref, o_ref, acc_ref, *, activation):
    """Tiled matmul: bf16 inputs, f32 accumulator, bias + optional activation at finalize."""
    @pl.when(pl.program_id(2) == 0)
    def _():
        acc_ref[...] = jnp.zeros_like(acc_ref)

    acc_ref[...] += jnp.dot(x_ref[...], w_ref[...],
                            preferred_element_type=jnp.float32)

    @pl.when(pl.program_id(2) == pl.num_programs(2) - 1)
    def _():
        acc = acc_ref[...] + b_ref[...]
        if activation == "gelu":
            # TODO(synk): HF BERT default is exact erf-GELU; tanh approximation used for
            # guaranteed Mosaic lowering.
            acc = jax.nn.gelu(acc, approximate=True)
        elif activation == "tanh":
            acc = jnp.tanh(acc)
        o_ref[...] = acc.astype(o_ref.dtype)


def linear(x2d, w, b, activation=None, out_dtype=jnp.bfloat16):
    """x2d: [M, K], w: [K, N], b: [N] -> [M, N].  bf16 MXU inputs, f32 accumulation."""
    M, K = x2d.shape
    N = w.shape[1]
    tm = _pick_tile(M, 512, 8)
    tn = _pick_tile(N, 512, 256)     # multiple of 256 matches the 256x256 MXU (v6e/v7x)
    tk = _pick_tile(K, 1024, 128)
    grid = (M // tm, N // tn, K // tk)
    b2 = b.reshape(1, N).astype(jnp.float32)
    return pl.pallas_call(
        functools.partial(_matmul_kernel, activation=activation),
        out_shape=jax.ShapeDtypeStruct((M, N), out_dtype),
        grid=grid,
        in_specs=[
            pl.BlockSpec((tm, tk), lambda i, j, k: (i, k)),
            pl.BlockSpec((tk, tn), lambda i, j, k: (k, j)),
            pl.BlockSpec((1, tn), lambda i, j, k: (0, j)),   # index constant over k
        ],
        out_specs=pl.BlockSpec((tm, tn), lambda i, j, k: (i, j)),
        scratch_shapes=[pltpu.VMEM((tm, tn), jnp.float32)],
        compiler_params=pltpu.CompilerParams(
            dimension_semantics=("parallel", "parallel", "arbitrary")),
    )(x2d.astype(jnp.bfloat16), w.astype(jnp.bfloat16), b2)


def _ln_finish(x, g_ref, b_ref, o_ref):
    mu = jnp.mean(x, axis=-1, keepdims=True)
    var = jnp.mean((x - mu) * (x - mu), axis=-1, keepdims=True)
    y = (x - mu) * jax.lax.rsqrt(var + 1e-12)
    o_ref[...] = (y * g_ref[...] + b_ref[...]).astype(o_ref.dtype)


def _ln_kernel(x_ref, g_ref, b_ref, o_ref):
    _ln_finish(x_ref[...].astype(jnp.float32), g_ref, b_ref, o_ref)


def layer_norm(x2d, gamma, beta, out_dtype=jnp.bfloat16):
    M, H = x2d.shape
    tm = _pick_tile(M, 512, 8)
    return pl.pallas_call(
        _ln_kernel,
        out_shape=jax.ShapeDtypeStruct((M, H), out_dtype),
        grid=(M // tm,),
        in_specs=[
            pl.BlockSpec((tm, H), lambda i: (i, 0)),
            pl.BlockSpec((1, H), lambda i: (0, 0)),
            pl.BlockSpec((1, H), lambda i: (0, 0)),
        ],
        out_specs=pl.BlockSpec((tm, H), lambda i: (i, 0)),
        compiler_params=pltpu.CompilerParams(dimension_semantics=("parallel",)),
    )(x2d, gamma.reshape(1, H).astype(jnp.float32),
      beta.reshape(1, H).astype(jnp.float32))


def _matmul_add_ln_kernel(x_ref, w_ref, b_ref, r_ref, g_ref, bb_ref, o_ref, acc_ref):
    """Matmul with residual-add + LayerNorm fused into the finalize (tn == full N)."""
    @pl.when(pl.program_id(1) == 0)
    def _():
        acc_ref[...] = jnp.zeros_like(acc_ref)

    acc_ref[...] += jnp.dot(x_ref[...], w_ref[...],
                            preferred_element_type=jnp.float32)

    @pl.when(pl.program_id(1) == pl.num_programs(1) - 1)
    def _():
        x = acc_ref[...] + b_ref[...] + r_ref[...].astype(jnp.float32)
        _ln_finish(x, g_ref, bb_ref, o_ref)


def linear_add_ln(x2d, w, b, res2d, gamma, beta, out_dtype=jnp.bfloat16):
    """ln((x2d @ w + b) + res2d) in one kernel: no separate add+LN HBM round trip."""
    M, K = x2d.shape
    N = w.shape[1]                              # full output width (LN needs all lanes)
    tm = _pick_tile(M, 512, 8)
    tk = _pick_tile(K, 1024, 128)
    grid = (M // tm, K // tk)
    return pl.pallas_call(
        _matmul_add_ln_kernel,
        out_shape=jax.ShapeDtypeStruct((M, N), out_dtype),
        grid=grid,
        in_specs=[
            pl.BlockSpec((tm, tk), lambda i, k: (i, k)),
            pl.BlockSpec((tk, N), lambda i, k: (k, 0)),
            pl.BlockSpec((1, N), lambda i, k: (0, 0)),
            pl.BlockSpec((tm, N), lambda i, k: (i, 0)),
            pl.BlockSpec((1, N), lambda i, k: (0, 0)),
            pl.BlockSpec((1, N), lambda i, k: (0, 0)),
        ],
        out_specs=pl.BlockSpec((tm, N), lambda i, k: (i, 0)),
        scratch_shapes=[pltpu.VMEM((tm, N), jnp.float32)],
        compiler_params=pltpu.CompilerParams(
            dimension_semantics=("parallel", "arbitrary")),
    )(x2d.astype(jnp.bfloat16), w.astype(jnp.bfloat16),
      b.reshape(1, N).astype(jnp.float32), res2d,
      gamma.reshape(1, N).astype(jnp.float32),
      beta.reshape(1, N).astype(jnp.float32))


def _attn_kernel(q_ref, k_ref, v_ref, m_ref, o_ref, *, heads, head_dim, scale,
                 q_off, k_off, v_off):
    """One (batch, head-group) grid point.  `heads` is the number of heads in the group
    (2 at real BERT shapes -> 128-lane group width)."""
    qkv_q = q_ref[0]                 # [S, W] bf16
    qkv_k = k_ref[0]
    qkv_v = v_ref[0]
    m = m_ref[0]                     # [1, S] f32 additive key mask
    S = qkv_q.shape[0]
    m_b = jnp.broadcast_to(m, (S, S))            # hoisted out of the head loop
    ctxs = []
    for h in range(heads):           # tiny static loop (<= 2 heads live at a time)
        lo = h * head_dim
        q = qkv_q[:, q_off + lo:q_off + lo + head_dim]
        k = qkv_k[:, k_off + lo:k_off + lo + head_dim]
        v = qkv_v[:, v_off + lo:v_off + lo + head_dim]
        # q @ k^T without explicit transpose (contract last dims), f32 accumulate.
        s = jax.lax.dot_general(
            q, k, (((1,), (1,)), ((), ())), preferred_element_type=jnp.float32
        ) * scale + m_b
        s = s - jnp.max(s, axis=-1, keepdims=True)
        p = jnp.exp(s)
        p = p * pl.reciprocal(jnp.sum(p, axis=-1, keepdims=True), approx=True)
        ctxs.append(jnp.dot(p.astype(jnp.bfloat16), v,
                            preferred_element_type=jnp.float32))
    out = jnp.concatenate(ctxs, axis=-1) if heads > 1 else ctxs[0]
    # Single lane-dense store of the whole group (128 lanes at real shapes, full H here).
    o_ref[...] = out[None].astype(o_ref.dtype)


def mha_attention(qkv, add_mask, num_heads, head_dim, scale):
    """qkv: [B, S, 3H] (q|k|v fused on last dim), add_mask: [B, 1, S] -> [B, S, H] bf16."""
    B, S, H3 = qkv.shape
    H = num_heads * head_dim
    # Group heads so each group's lane width is 128 (head pairs at Dh=64) when possible.
    if H % 128 == 0 and 128 % head_dim == 0:
        group_w = 128
    else:
        group_w = H                  # tiny-H fallback (the test config)
    hpg = group_w // head_dim        # heads per group
    G = num_heads // hpg             # head groups
    if group_w == H:
        # Single full-width (legal) block; kernel slices q/k/v with static offsets.
        qkv_spec = pl.BlockSpec((1, S, H3), lambda b, g: (b, 0, 0))
        in_specs = [qkv_spec, qkv_spec, qkv_spec,
                    pl.BlockSpec((1, 1, S), lambda b, g: (b, 0, 0))]
        offs = (0, H, 2 * H)
    else:
        # Lane-aligned 128-wide group slices straight out of the fused QKV activation.
        in_specs = [
            pl.BlockSpec((1, S, group_w), lambda b, g: (b, 0, g)),
            pl.BlockSpec((1, S, group_w), lambda b, g: (b, 0, G + g)),
            pl.BlockSpec((1, S, group_w), lambda b, g: (b, 0, 2 * G + g)),
            pl.BlockSpec((1, 1, S), lambda b, g: (b, 0, 0)),
        ]
        offs = (0, 0, 0)
    # TODO(synk): for S >= ~2048 on v7x (64 MiB VMEM) switch to a K/V-tiled online-softmax
    # (flash-style) inner loop instead of materializing the full SxS score matrix.
    return pl.pallas_call(
        functools.partial(_attn_kernel, heads=hpg, head_dim=head_dim, scale=scale,
                          q_off=offs[0], k_off=offs[1], v_off=offs[2]),
        out_shape=jax.ShapeDtypeStruct((B, S, H), jnp.bfloat16),
        grid=(B, G),
        in_specs=in_specs,
        out_specs=pl.BlockSpec((1, S, group_w), lambda b, g: (b, 0, g)),
        compiler_params=pltpu.CompilerParams(
            dimension_semantics=("parallel", "parallel")),
    )(qkv, qkv, qkv, add_mask)


def _lstm_kernel(xw_ref, whh_ref, o_ref, h_sc, c_sc, *, tchunk, hidden):
    """Grid = (batch_shard, time_chunk).  h (bf16) / c (f32) carried in VMEM across chunks."""
    @pl.when(pl.program_id(1) == 0)
    def _():
        h_sc[...] = jnp.zeros_like(h_sc)
        c_sc[...] = jnp.zeros_like(c_sc)

    H = hidden
    whh = whh_ref[...]               # [H, 4H] bf16, resident for the whole chunk
    h = h_sc[...]                    # [Bs, H] bf16 (no per-step cast before the matmul)
    c = c_sc[...]                    # [Bs, H] f32

    # Static loop: tchunk is small and the recurrence serializes the steps anyway.
    for t in range(tchunk):
        x_t = jnp.squeeze(xw_ref[:, t:t + 1, :], axis=1)          # [Bs, 4H] bf16
        gates = x_t.astype(jnp.float32) + jnp.dot(
            h, whh, preferred_element_type=jnp.float32)
        # Gate order (i, f, g, o) matches torch.nn.LSTM; at real shapes H is a multiple
        # of 128 so these are lane-aligned slices.
        i = jax.nn.sigmoid(gates[:, 0:H])
        f = jax.nn.sigmoid(gates[:, H:2 * H])
        g = jnp.tanh(gates[:, 2 * H:3 * H])
        og = jax.nn.sigmoid(gates[:, 3 * H:4 * H])
        c = f * c + i * g
        h = (og * jnp.tanh(c)).astype(jnp.bfloat16)
        o_ref[:, t:t + 1, :] = h[:, None, :].astype(o_ref.dtype)

    h_sc[...] = h
    c_sc[...] = c


def lstm_forward(x, w_ih_t, w_hh_t, bias):
    """PyTorch-semantics single-layer unidirectional LSTM, batch_first.
    x: [B, S, H] bf16; w_ih_t / w_hh_t: [H, 4H]; bias = b_ih + b_hh. Returns [B, S, H] bf16."""
    B, S, H = x.shape
    # Input projection for all timesteps at once; bf16 output halves the HBM round trip
    # (the matmul itself still accumulates in f32 inside linear()).
    xw = linear(x.reshape(B * S, H), w_ih_t, bias, out_dtype=jnp.bfloat16)
    xw = xw.reshape(B, S, 4 * H)                 # [B, S, 4H] — no JAX transposes
    T = _time_chunk(S, 16)
    NB = 2 if B % 2 == 0 else 1                  # batch shards: v7x megacore parallelism
    Bs = B // NB
    return pl.pallas_call(
        functools.partial(_lstm_kernel, tchunk=T, hidden=H),
        out_shape=jax.ShapeDtypeStruct((B, S, H), jnp.bfloat16),
        grid=(NB, S // T),
        in_specs=[
            pl.BlockSpec((Bs, T, 4 * H), lambda p, c: (p, c, 0)),
            pl.BlockSpec((H, 4 * H), lambda p, c: (0, 0)),
        ],
        out_specs=pl.BlockSpec((Bs, T, H), lambda p, c: (p, c, 0)),
        scratch_shapes=[
            pltpu.VMEM((Bs, H), jnp.bfloat16),   # h
            pltpu.VMEM((Bs, H), jnp.float32),    # c
        ],
        compiler_params=pltpu.CompilerParams(
            dimension_semantics=("parallel", "arbitrary")),
    )(xw, w_hh_t)


# ------------------------------ Model (glue) -------------------------------

def bert_forward(params, input_ids, cfg):
    B, S = input_ids.shape
    H, nH = cfg["hidden"], cfg["heads"]
    Dh = H // nH
    scale = 1.0 / math.sqrt(Dh)

    # Embeddings (gather is glue JAX; not the hot path).
    word = jnp.take(params["word_emb"], input_ids, axis=0)          # [B, S, H]
    pos = params["pos_emb"][:S][None]                               # [1, S, H]
    tok = params["type_emb"][0][None, None]                         # [1, 1, H]
    emb = (word + pos + tok).astype(jnp.float32)
    h = layer_norm(emb.reshape(B * S, H), params["emb_ln_g"],
                   params["emb_ln_b"]).reshape(B, S, H)             # bf16 activations

    # attention_mask = bert_inputs.ne(0).float() -> additive extended mask
    attn_mask = (input_ids != 0).astype(jnp.float32)                # [B, S]
    add_mask = ((1.0 - attn_mask) * -10000.0)[:, None, :]           # [B, 1, S]

    for layer in params["layers"]:
        x2 = h.reshape(B * S, H)
        # Fused QKV projection: single [H, 3H] matmul (weights pre-concatenated at init).
        qkv = linear(x2, layer["wqkv"], layer["bqkv"])              # [B*S, 3H] bf16
        ctx = mha_attention(qkv.reshape(B, S, 3 * H), add_mask, nH, Dh, scale)
        # Attention output projection with residual + LayerNorm fused into the finalize.
        h1 = linear_add_ln(ctx.reshape(B * S, H), layer["wo"], layer["bo"],
                           x2, layer["ln1_g"], layer["ln1_b"])
        inter = linear(h1, layer["wi"], layer["bi"], activation="gelu")
        # FFN down projection with residual + LayerNorm fused into the finalize.
        h = linear_add_ln(inter, layer["wf"], layer["bf"],
                          h1, layer["ln2_g"], layer["ln2_b"]).reshape(B, S, H)

    sequence_output = h
    # Pooler: tanh(W @ hidden[CLS]) -> cls_output (unused downstream, kept for fidelity)
    cls_output = linear(sequence_output[:, 0, :], params["pool_w"],
                        params["pool_b"], activation="tanh")
    return sequence_output, cls_output


def model_forward(params, bert_inputs, cfg):
    seq_out, _cls_out = bert_forward(params, bert_inputs, cfg)
    # torch.nn.Dropout(0.1) is identity at inference time.
    B, S, H = seq_out.shape
    lstm_out = lstm_forward(seq_out, params["lstm_w_ih_t"], params["lstm_w_hh_t"],
                            params["lstm_bias"])                    # [B, S, H]
    # Classifier: lane-dense (128-padded) output slab, sliced back to label_num in JAX.
    L = cfg["label_num"]
    logits = linear(lstm_out.reshape(B * S, H), params["cls_w_pad"],
                    params["cls_b_pad"], out_dtype=jnp.float32)
    return logits[:, :L].reshape(B, S, L)
    # TODO(synk): CRF layer is only used in compute_loss/decode, not in forward().


# --------------------------- deterministic params --------------------------

def init_params(key, cfg):
    H, I = cfg["hidden"], cfg["intermediate"]
    L, V, P = cfg["label_num"], cfg["vocab"], cfg["max_pos"]
    keys = iter(jax.random.split(key, 256))

    def dense(shape):
        return (0.02 * jax.random.normal(next(keys), shape)).astype(jnp.float32)

    params = dict(
        word_emb=dense((V, H)),
        pos_emb=dense((P, H)),
        type_emb=dense((2, H)),
        emb_ln_g=jnp.ones((H,), jnp.float32),
        emb_ln_b=jnp.zeros((H,), jnp.float32),
        layers=[],
        pool_w=dense((H, H)),
        pool_b=jnp.zeros((H,), jnp.float32),
        lstm_w_ih=dense((4 * H, H)),
        lstm_w_hh=dense((4 * H, H)),
        lstm_b_ih=jnp.zeros((4 * H,), jnp.float32),
        lstm_b_hh=jnp.zeros((4 * H,), jnp.float32),
        cls_w=dense((H, L)),
        cls_b=jnp.zeros((L,), jnp.float32),
    )
    for _ in range(cfg["layers"]):
        params["layers"].append(dict(
            wq=dense((H, H)), bq=jnp.zeros((H,), jnp.float32),
            wk=dense((H, H)), bk=jnp.zeros((H,), jnp.float32),
            wv=dense((H, H)), bv=jnp.zeros((H,), jnp.float32),
            wo=dense((H, H)), bo=jnp.zeros((H,), jnp.float32),
            ln1_g=jnp.ones((H,), jnp.float32), ln1_b=jnp.zeros((H,), jnp.float32),
            wi=dense((H, I)), bi=jnp.zeros((I,), jnp.float32),
            wf=dense((I, H)), bf=jnp.zeros((H,), jnp.float32),
            ln2_g=jnp.ones((H,), jnp.float32), ln2_b=jnp.zeros((H,), jnp.float32),
        ))
    return params


def prepare_params(params, cfg):
    """One-time weight preprocessing hoisted out of the forward pass:
    QKV concat, bf16 weight casts, LSTM weight transposes, classifier 128-lane padding."""
    H, L = cfg["hidden"], cfg["label_num"]
    Lp = ((L + 127) // 128) * 128
    p = dict(params)
    p["layers"] = []
    for layer in params["layers"]:
        l = dict(layer)
        l["wqkv"] = jnp.concatenate(
            [layer["wq"], layer["wk"], layer["wv"]], axis=1).astype(jnp.bfloat16)
        l["bqkv"] = jnp.concatenate([layer["bq"], layer["bk"], layer["bv"]])
        l["wo"] = layer["wo"].astype(jnp.bfloat16)
        l["wi"] = layer["wi"].astype(jnp.bfloat16)
        l["wf"] = layer["wf"].astype(jnp.bfloat16)
        p["layers"].append(l)
    p["pool_w"] = params["pool_w"].astype(jnp.bfloat16)
    p["lstm_w_ih_t"] = params["lstm_w_ih"].T.astype(jnp.bfloat16)
    p["lstm_w_hh_t"] = params["lstm_w_hh"].T.astype(jnp.bfloat16)
    p["lstm_bias"] = params["lstm_b_ih"] + params["lstm_b_hh"]
    p["cls_w_pad"] = jnp.zeros((H, Lp), jnp.bfloat16).at[:, :L].set(
        params["cls_w"].astype(jnp.bfloat16))
    p["cls_b_pad"] = jnp.zeros((Lp,), jnp.float32).at[:L].set(params["cls_b"])
    return p


if __name__ == "__main__":
    cfg = dict(hidden=32, intermediate=64, heads=2, layers=2,
               vocab=30, max_pos=16, label_num=5)
    key = jax.random.PRNGKey(0)
    pkey, ikey = jax.random.split(key)
    params = prepare_params(init_params(pkey, cfg), cfg)

    B, S = 2, 8
    bert_inputs = jax.random.randint(ikey, (B, S), 0, cfg["vocab"], dtype=jnp.int32)

    logits = model_forward(params, bert_inputs, cfg)
    jax.block_until_ready(logits)
    assert logits.shape == (B, S, cfg["label_num"])
    assert logits.dtype == jnp.float32
    print("KERNEL_OK")
</pallas_src>

<mosaic_0001>
module attributes {stable_mosaic.version = 11 : i64} {
  func.func @_ln_kernel(%arg0: i32, %arg1: memref<16x32xf32, #tpu.memory_space<vmem>>, %arg2: memref<1x32xf32, #tpu.memory_space<vmem>>, %arg3: memref<1x32xf32, #tpu.memory_space<vmem>>, %arg4: memref<16x32xbf16, #tpu.memory_space<vmem>>) attributes {dimension_semantics = [#tpu.dimension_semantics<parallel>], iteration_bounds = array<i64: 1>, scalar_prefetch = 0 : i64, scratch_operands = 0 : i64, tpu.core_type = #tpu.core_type<tc>, window_params = [{transform_indices = @transform_0, window_bounds = array<i64: 16, 32>}, {pipeline_mode = #tpu.pipeline_mode<synchronous>, transform_indices = @transform_1, window_bounds = array<i64: 1, 32>}, {pipeline_mode = #tpu.pipeline_mode<synchronous>, transform_indices = @transform_2, window_bounds = array<i64: 1, 32>}, {transform_indices = @transform_3, window_bounds = array<i64: 16, 32>}]} {
    %c0 = arith.constant 0 : index
    %c0_0 = arith.constant 0 : index
    %0 = vector.load %arg1[%c0, %c0_0] : memref<16x32xf32, #tpu.memory_space<vmem>>, vector<16x32xf32>
    %cst = arith.constant dense<0.000000e+00> : vector<16xf32>
    %1 = vector.multi_reduction <add>, %0, %cst [1] : vector<16x32xf32> to vector<16xf32>
    %2 = vector.shape_cast %1 : vector<16xf32> to vector<16x1xf32>
    %cst_1 = arith.constant 3.200000e+01 : f32
    %3 = vector.broadcast %cst_1 : f32 to vector<16x1xf32>
    %4 = arith.divf %2, %3 : vector<16x1xf32>
    %5 = vector.broadcast %4 : vector<16x1xf32> to vector<16x32xf32>
    %6 = arith.subf %0, %5 : vector<16x32xf32>
    %7 = vector.broadcast %4 : vector<16x1xf32> to vector<16x32xf32>
    %8 = arith.subf %0, %7 : vector<16x32xf32>
    %9 = arith.mulf %6, %8 : vector<16x32xf32>
    %cst_2 = arith.constant dense<0.000000e+00> : vector<16xf32>
    %10 = vector.multi_reduction <add>, %9, %cst_2 [1] : vector<16x32xf32> to vector<16xf32>
    %11 = vector.shape_cast %10 : vector<16xf32> to vector<16x1xf32>
    %cst_3 = arith.constant 3.200000e+01 : f32
    %12 = vector.broadcast %cst_3 : f32 to vector<16x1xf32>
    %13 = arith.divf %11, %12 : vector<16x1xf32>
    %14 = vector.broadcast %4 : vector<16x1xf32> to vector<16x32xf32>
    %15 = arith.subf %0, %14 : vector<16x32xf32>
    %cst_4 = arith.constant 9.99999996E-13 : f32
    %16 = vector.broadcast %cst_4 : f32 to vector<16x1xf32>
    %17 = arith.addf %13, %16 : vector<16x1xf32>
    %18 = math.rsqrt %17 : vector<16x1xf32>
    %19 = vector.broadcast %18 : vector<16x1xf32> to vector<16x32xf32>
    %20 = arith.mulf %15, %19 : vector<16x32xf32>
    %c0_5 = arith.constant 0 : index
    %c0_6 = arith.constant 0 : index
    %21 = vector.load %arg2[%c0_5, %c0_6] : memref<1x32xf32, #tpu.memory_space<vmem>>, vector<1x32xf32>
    %22 = vector.broadcast %21 : vector<1x32xf32> to vector<16x32xf32>
    %23 = arith.mulf %20, %22 : vector<16x32xf32>
    %c0_7 = arith.constant 0 : index
    %c0_8 = arith.constant 0 : index
    %24 = vector.load %arg3[%c0_7, %c0_8] : memref<1x32xf32, #tpu.memory_space<vmem>>, vector<1x32xf32>
    %25 = vector.broadcast %24 : vector<1x32xf32> to vector<16x32xf32>
    %26 = arith.addf %23, %25 : vector<16x32xf32>
    %27 = arith.truncf %26 : vector<16x32xf32> to vector<16x32xbf16>
    %c0_9 = arith.constant 0 : index
    %c0_10 = arith.constant 0 : index
    %28 = vector.load %arg4[%c0_9, %c0_10] : memref<16x32xbf16, #tpu.memory_space<vmem>>, vector<16x32xbf16>
    tpu.vector_store %arg4[%c0_9, %c0_10], %27 {strides = array<i32>} : memref<16x32xbf16, #tpu.memory_space<vmem>>, vector<16x32xbf16>,
    return
  }
  func.func @transform_0(%arg0: i32) -> (i32, i32) {
    %c0_i32 = arith.constant 0 : i32
    %c0_i32_0 = arith.constant 0 : i32
    return %arg0, %c0_i32 : i32, i32
  }
  func.func @transform_1(%arg0: i32) -> (i32, i32) {
    %c0_i32 = arith.constant 0 : i32
    %c0_i32_0 = arith.constant 0 : i32
    %c0_i32_1 = arith.constant 0 : i32
    return %c0_i32, %c0_i32_0 : i32, i32
  }
  func.func @transform_2(%arg0: i32) -> (i32, i32) {
    %c0_i32 = arith.constant 0 : i32
    %c0_i32_0 = arith.constant 0 : i32
    %c0_i32_1 = arith.constant 0 : i32
    return %c0_i32, %c0_i32_0 : i32, i32
  }
  func.func @transform_3(%arg0: i32) -> (i32, i32) {
    %c0_i32 = arith.constant 0 : i32
    %c0_i32_0 = arith.constant 0 : i32
    return %arg0, %c0_i32 : i32, i32
  }
}

</mosaic_0001>

<llo_original>
// kernel: tpu_custom_call.1
$region0: #{tpu_custom_call.1}
  #allocation0 [shape = 'u32[]', space=smem, size = 0x4, offset = 0x4, fixed_abs, tag = 'smem constant byte address 0x4 - core index']
  #allocation1 [shape = 'u32[144,128]{1,0:T(1,128)}', space=vmem, size = 0x12000, scoped, tag = 'internal scratch']
  %s0 = inlined_call_operand.hbm [shape: f32[16,32], index: 0, kind: input, shape index: {}]
  %s1 = inlined_call_operand.vmem [shape: f32[1,32], index: 1, kind: input, shape index: {}]
  %s2 = inlined_call_operand.vmem [shape: f32[1,32], index: 2, kind: input, shape index: {}]
  %s3 = inlined_call_operand.hbm [shape: bf16[16,32], index: 3, kind: output, shape index: {}]
  %s4 = sld [smem:[#allocation0]]
  $region26: #{tpu_custom_call.1} parent=0
    _
  %s6 = ssub.s32 1, %s4
  %s7 = scalar_select 0, %s6, %s4
  $region1: #{tpu_custom_call.1} parent=0
    #allocation2 [shape = 'u8[8192]{0}', space=vmem, size = 0x2000, scoped, tag = 'input window, operand 0, single buffered']
    #allocation3 [shape = 's32[1]{0}', space=sflag, size = 0x4, scoped, tag = 'scoped memory for tpu_custom_call.1']
    #allocation4 [shape = 's32[1]{0}', space=sflag, size = 0x4, scoped, tag = 'scoped memory for tpu_custom_call.1']
    #allocation5 [shape = 'u8[4096]{0}', space=vmem, size = 0x1000, scoped, tag = 'output window, operand 0, single buffered']
    %8 = vsyncpa [#allocation3], 0
    %9 = vsyncpa [#allocation4], 0
    // Predicated region
    $region2: #{tpu_custom_call.1} parent=1 // pred_check
      _
    $region3: #{tpu_custom_call.1} parent=1 // pred_check_branch
      %11 = sbr.rel (0) target = $region5
    $region4: #{tpu_custom_call.1} parent=1 // pred_region
      %s13 = ssub.s32 256, 256
      %14 = vsyncadd [#allocation3], %s13
      %s15 = sshll.u32 [#allocation2], 4
      %s16 = int_to_ptr.vmem [resolvable:$true] %s15
      %21 = dma.hbm_to_vmem [thread:$0]  %s0, 256, %s16, [#allocation3], 128, 128, 8
    $region5: #{tpu_custom_call.1} parent=1 // pred_fallthru
      _
    // Predicated region
    $region6: #{tpu_custom_call.1} parent=1 // pred_check
      _
    $region7: #{tpu_custom_call.1} parent=1 // pred_check_branch
      %23 = sbr.rel (0) target = $region9
    $region8: #{tpu_custom_call.1} parent=1 // pred_region
      _
    $region9: #{tpu_custom_call.1} parent=1 // pred_fallthru
      _
    // Predicated region
    $region10: #{tpu_custom_call.1} parent=1 // pred_check
      _
    $region11: #{tpu_custom_call.1} parent=1 // pred_check_branch
      %25 = sbr.rel (0) target = $region13
    $region12: #{tpu_custom_call.1} parent=1 // pred_region
      _
    $region13: #{tpu_custom_call.1} parent=1 // pred_fallthru
      _
    // Predicated region
    $region14: #{tpu_custom_call.1} parent=1 // pred_check
      _
    $region15: #{tpu_custom_call.1} parent=1 // pred_check_branch
      %27 = sbr.rel (0) target = $region17
    $region16: #{tpu_custom_call.1} parent=1 // pred_region
      %28 = dma.done [#allocation3], 256
    $region17: #{tpu_custom_call.1} parent=1 // pred_fallthru
      _
    %v29 = vld [vmem:[#allocation2] sm:$0xff]
    %v30 = vld [vmem:[#allocation2 + $0x8] sm:$0xff]
    %vm31 = vcmask 261120
    %v32 = vsel %vm31, %v29, 0.0
    %33 = vadd.xlane.f32.xlu0 %v32
    %v34 = vpop.xlane.xlu0 %33
    %v35 = vsel %vm31, %v30, 0.0
    %36 = vadd.xlane.f32.xlu0 %v35
    %v37 = vpop.xlane.xlu0 %36
    %v38 = vrcp.pop 32.0
    %v39 = vmul.f32 %v34, %v38
    %v40 = vmul.f32 %v37, %v38
    %v41 = vsub.f32 %v29, %v39
    %v42 = vsub.f32 %v30, %v40
    %v43 = vmul.f32 %v41, %v41
    %v44 = vmul.f32 %v42, %v42
    %v45 = vsel %vm31, %v43, 0.0
    %46 = vadd.xlane.f32.xlu0 %v45
    %v47 = vpop.xlane.xlu0 %46
    %v48 = vsel %vm31, %v44, 0.0
    %49 = vadd.xlane.f32.xlu0 %v48
    %v50 = vpop.xlane.xlu0 %49
    %v51 = vmul.f32 %v47, %v38
    %v52 = vmul.f32 %v50, %v38
    %v53 = vadd.f32 %v51, 1e-12
    %v54 = vadd.f32 %v52, 1e-12
    %v55 = vrsqrt.pop %v53
    %v56 = vrsqrt.pop %v54
    %v57 = vmul.f32 %v41, %v55
    %v58 = vmul.f32 %v42, %v56
    %v59 = vld [vmem:[%s1] sm:$0x1]
    %v61 = vlaneseq
    %v62 = vshrl.u32 %v61, 7
    %v63 = vsub.s32 0, %v62
    %v64 = vrot.slane %v59, %v63
    %v66 = vmul.f32 %v57, %v64
    %v67 = vmul.f32 %v58, %v64
    %v68 = vld [vmem:[%s2] sm:$0x1]
    %v70 = vlaneseq
    %v71 = vshrl.u32 %v70, 7
    %v72 = vsub.s32 0, %v71
    %v73 = vrot.slane %v68, %v72
    %v75 = vadd.f32 %v66, %v73
    %v76 = vadd.f32 %v67, %v73
    %v77 = vpack.c.bf16 %v76, %v75
    %v79 = vunpack.c.l.b16 %v77
    %v80 = vunpack.c.h.b16 %v77
    %v81 = vpack.c.b16 %v79, %v79
    %v82 = vpack.c.b16 %v80, %v80
    %vm85 = vcmask 257024
    %86 = vst.msk [vmem:[#allocation5] sm:$0xf] %vm85, %v81
    %87 = vst.msk [vmem:[#allocation5 + $0x4] sm:$0xf] %vm85, %v82
    // Predicated region
    $region18: #{tpu_custom_call.1} parent=1 // pred_check
      _
    $region19: #{tpu_custom_call.1} parent=1 // pred_check_branch
      %89 = sbr.rel (0) target = $region21
    $region20: #{tpu_custom_call.1} parent=1 // pred_region
      %s91 = ssub.s32 128, 128
      %92 = vsyncadd [#allocation4], %s91
      %s93 = sshll.u32 [#allocation5], 4
      %s94 = int_to_ptr.vmem [resolvable:$true] %s93
      %99 = dma.vmem_to_hbm [thread:$0]  %s94, 128, %s3, [#allocation4], 64, 64, 4
    $region21: #{tpu_custom_call.1} parent=1 // pred_fallthru
      _
    // Predicated region
    $region22: #{tpu_custom_call.1} parent=1 // pred_check
      _
    $region23: #{tpu_custom_call.1} parent=1 // pred_check_branch
      %101 = sbr.rel (0) target = $region25
    $region24: #{tpu_custom_call.1} parent=1 // pred_region
      %102 = dma.done [#allocation4], 128
    $region25: #{tpu_custom_call.1} parent=1 // pred_fallthru
      _
    %103 = vsyncpa [#allocation3], 1
    %104 = vsyncpa [#allocation4], 1

</llo_original>
